<compile_context>
chip_gen: v6e
topology: v6e:2x2x1
jax: 0.10.0
libtpu: 0.0.40
codegen_flags: <defaults>
</compile_context>

<pallas_src>
import functools

import jax
import jax.numpy as jnp
from jax.experimental import pallas as pl
from jax.experimental.pallas import tpu as pltpu

LANES = 128


def _make_matmul_kernel(nb):
    def kernel(p_ref, w_ref, b_ref, o_ref):
        # p_ref: (nb, HW, K)   bf16 im2col patches for the nb images of this block
        # w_ref: (K, Cp)       bf16 weights, Cout zero-padded to Cp (multiple of 128)
        # b_ref: (1, Cp)       f32 bias, zero-padded
        # o_ref: (nb, HW, Cp)  f32 conv output (lane-dense: Cp % 128 == 0 -> unmasked stores)
        w = w_ref[...]
        b = b_ref[...]
        for i in range(nb):  # static unroll over the images in this batch block
            # Single im2col matmul per image: (HW, K) x (K, Cp) -> (HW, Cp), f32 accumulate on MXU.
            acc = jnp.dot(p_ref[i], w, preferred_element_type=jnp.float32)
            o_ref[i] = (acc + b).astype(o_ref.dtype)  # bias add in f32 (v5e: no bf16 VPU)
    return kernel


@functools.partial(jax.jit, static_argnames=("out_capsules", "out_features", "stride"))
def primary_capsule_forward(x_nchw, weight_oihw, bias, *, out_capsules, out_features, stride=1):
    """x_nchw: (N, Cin, H, W) -> (N, out_capsules*H_out*W_out, out_features). groups=1 conv."""
    N, Cin, H, W = x_nchw.shape
    Cout, wcin, KH, KW = weight_oihw.shape
    assert wcin == Cin and Cout == out_capsules * out_features
    SH = SW = stride
    H_out = (H - KH) // SH + 1
    W_out = (W - KW) // SW + 1
    HW = H_out * W_out
    Kdim = KH * KW * Cin
    Cp = ((Cout + LANES - 1) // LANES) * LANES  # pad Cout to a multiple of 128 lanes

    # ---- wrapper: im2col patch gather (K ordering = (kh, kw, cin)), bf16 operands ----
    # NCHW -> NHWC is a few-KB transpose that XLA fuses with the gather below.
    x_nhwc = jnp.transpose(x_nchw, (0, 2, 3, 1)).astype(jnp.bfloat16)  # (N, H, W, Cin)
    taps = []
    for kh in range(KH):
        for kw in range(KW):
            taps.append(jax.lax.slice(
                x_nhwc,
                (0, kh, kw, 0),
                (N, kh + SH * (H_out - 1) + 1, kw + SW * (W_out - 1) + 1, Cin),
                (1, SH, SW, 1)))                                       # (N, H_out, W_out, Cin)
    patches = jnp.concatenate(taps, axis=-1).reshape(N, HW, Kdim)      # (N, HW, KH*KW*Cin) bf16

    # Weights: OIHW -> (KH, KW, Cin, Cout) -> (Kdim, Cout), matching the patch K ordering.
    w2d = jnp.transpose(weight_oihw, (2, 3, 1, 0)).reshape(Kdim, Cout).astype(jnp.bfloat16)
    w_pad = jnp.zeros((Kdim, Cp), jnp.bfloat16).at[:, :Cout].set(w2d)
    b_pad = jnp.zeros((1, Cp), jnp.float32).at[:, :Cout].set(bias.astype(jnp.float32))

    # ---- batch-block policy: >= 2 parallel grid steps (v7x: 2 TCs), multi-image blocks when
    #      N >= 4, capped so double-buffered blocks stay well under scoped VMEM on all chips.
    bytes_per_img = 2 * (HW * Cp * 4) + 2 * (HW * Kdim * 2)  # out + in, double-buffered
    nb_cap = max(1, (8 << 20) // max(1, bytes_per_img))
    nb = 1
    if N >= 4:
        target = min(N // 2, nb_cap)
        for cand in range(target, 0, -1):
            if N % cand == 0:
                nb = cand
                break
    grid = (N // nb,)

    kernel = _make_matmul_kernel(nb)

    conv_pad = pl.pallas_call(
        kernel,
        out_shape=jax.ShapeDtypeStruct((N, HW, Cp), jnp.float32),
        grid_spec=pltpu.PrefetchScalarGridSpec(
            num_scalar_prefetch=0,
            grid=grid,
            in_specs=[
                pl.BlockSpec((nb, HW, Kdim), lambda i: (i, 0, 0)),
                pl.BlockSpec((Kdim, Cp), lambda i: (0, 0)),
                pl.BlockSpec((1, Cp), lambda i: (0, 0)),
            ],
            out_specs=pl.BlockSpec((nb, HW, Cp), lambda i: (i, 0, 0)),
        ),
        compiler_params=pltpu.CompilerParams(dimension_semantics=("parallel",)),
    )(patches, w_pad, b_pad)

    # ---- wrapper: drop lane padding + capsule rearrange '(n d) h w -> (n h w) d' ----
    # The final layout ends in d=8 (< 128 lanes), so it can never be written lane-densely;
    # keeping this tiny permutation in XLA avoids an in-kernel relayout of the matmul tile.
    conv = conv_pad[:, :, :Cout].astype(x_nchw.dtype)                  # (N, HW, Cout)
    out = conv.reshape(N, H_out, W_out, out_capsules, out_features)
    out = jnp.transpose(out, (0, 3, 1, 2, 4))                          # (N, n, H_out, W_out, d)
    return out.reshape(N, out_capsules * H_out * W_out, out_features)


def init_primary_capsule_params(key, in_channels, out_capsules, out_features, kernel_size):
    """Deterministic Conv2d-style init (PyTorch kaiming-uniform-like bounds)."""
    KH = KW = kernel_size
    Cout = out_capsules * out_features
    fan_in = in_channels * KH * KW
    bound = 1.0 / jnp.sqrt(fan_in)
    kw_, kb_ = jax.random.split(key)
    weight = jax.random.uniform(kw_, (Cout, in_channels, KH, KW),
                                jnp.float32, minval=-bound, maxval=bound)
    bias = jax.random.uniform(kb_, (Cout,), jnp.float32, minval=-bound, maxval=bound)
    return weight, bias
    # TODO(synk): depthwise=True (groups=out_capsules*out_features) variant not implemented.


if __name__ == "__main__":
    # Module config: PrimaryCapsule(in_channels=4, out_capsules=4, out_features=8,
    #                               kernel_size=3, depthwise=False); stride=1 and 2 both checked.
    N, Cin, H, W = 2, 4, 16, 16
    out_capsules, out_features, ksize = 4, 8, 3

    key = jax.random.PRNGKey(0)
    kx, kp = jax.random.split(key)
    x = jax.random.normal(kx, (N, Cin, H, W), jnp.float32)             # NCHW, like PyTorch
    weight, bias = init_primary_capsule_params(kp, Cin, out_capsules, out_features, ksize)

    for stride in (1, 2):
        out = primary_capsule_forward(
            x, weight, bias,
            out_capsules=out_capsules, out_features=out_features, stride=stride)
        out = jax.block_until_ready(out)

        # Reference: XLA conv with the same bf16 operands / f32 accumulation + same rearrange.
        H_out = (H - ksize) // stride + 1
        W_out = (W - ksize) // stride + 1
        ref_conv = jax.lax.conv_general_dilated(
            x.astype(jnp.bfloat16), weight.astype(jnp.bfloat16),
            window_strides=(stride, stride), padding="VALID",
            dimension_numbers=("NCHW", "OIHW", "NCHW"),
            preferred_element_type=jnp.float32) + bias[None, :, None, None]
        ref = ref_conv.reshape(N, out_capsules, out_features, H_out, W_out)
        ref = jnp.transpose(ref, (0, 1, 3, 4, 2)).reshape(
            N, out_capsules * H_out * W_out, out_features)

        assert out.shape == (N, out_capsules * H_out * W_out, out_features), out.shape
        max_err = float(jnp.max(jnp.abs(out - ref)))
        assert jnp.allclose(out, ref, atol=2e-3, rtol=2e-3), max_err

    print("KERNEL_OK")
</pallas_src>

<mosaic_0001>
module attributes {stable_mosaic.version = 11 : i64} {
  func.func @kernel(%arg0: i32, %arg1: memref<1x196x36xbf16, #tpu.memory_space<vmem>>, %arg2: memref<36x128xbf16, #tpu.memory_space<vmem>>, %arg3: memref<1x128xf32, #tpu.memory_space<vmem>>, %arg4: memref<1x196x128xf32, #tpu.memory_space<vmem>>) attributes {dimension_semantics = [#tpu.dimension_semantics<parallel>], iteration_bounds = array<i64: 2>, scalar_prefetch = 0 : i64, scratch_operands = 0 : i64, tpu.core_type = #tpu.core_type<tc>, window_params = [{transform_indices = @transform_0, window_bounds = array<i64: 1, 196, 36>}, {pipeline_mode = #tpu.pipeline_mode<synchronous>, transform_indices = @transform_1, window_bounds = array<i64: 36, 128>}, {pipeline_mode = #tpu.pipeline_mode<synchronous>, transform_indices = @transform_2, window_bounds = array<i64: 1, 128>}, {transform_indices = @transform_3, window_bounds = array<i64: 1, 196, 128>}]} {
    %c0 = arith.constant 0 : index
    %c0_0 = arith.constant 0 : index
    %0 = vector.load %arg2[%c0, %c0_0] : memref<36x128xbf16, #tpu.memory_space<vmem>>, vector<36x128xbf16>
    %c0_1 = arith.constant 0 : index
    %c0_2 = arith.constant 0 : index
    %1 = vector.load %arg3[%c0_1, %c0_2] : memref<1x128xf32, #tpu.memory_space<vmem>>, vector<1x128xf32>
    %c0_3 = arith.constant 0 : index
    %c0_4 = arith.constant 0 : index
    %c0_5 = arith.constant 0 : index
    %2 = vector.load %arg1[%c0_3, %c0_4, %c0_5] : memref<1x196x36xbf16, #tpu.memory_space<vmem>>, vector<1x196x36xbf16>
    %3 = vector.shape_cast %2 : vector<1x196x36xbf16> to vector<196x36xbf16>
    %cst = arith.constant dense<0.000000e+00> : vector<196x128xf32>
    %4 = tpu.matmul %3, %0, %cst {dimension_numbers = #tpu.dot_dimension_numbers<[1], [0], [0], [1], [0, 0, 1, 1], [], []>} : vector<196x36xbf16>, vector<36x128xbf16>, vector<196x128xf32> -> vector<196x128xf32>
    %5 = vector.broadcast %1 : vector<1x128xf32> to vector<196x128xf32>
    %6 = arith.addf %4, %5 : vector<196x128xf32>
    %c0_6 = arith.constant 0 : index
    %c0_7 = arith.constant 0 : index
    %c0_8 = arith.constant 0 : index
    %7 = vector.load %arg4[%c0_6, %c0_7, %c0_8] : memref<1x196x128xf32, #tpu.memory_space<vmem>>, vector<1x196x128xf32>
    %8 = vector.shape_cast %7 : vector<1x196x128xf32> to vector<196x128xf32>
    %9 = vector.shape_cast %6 : vector<196x128xf32> to vector<1x196x128xf32>
    tpu.vector_store %arg4[%c0_6, %c0_7, %c0_8], %9 {strides = array<i32>} : memref<1x196x128xf32, #tpu.memory_space<vmem>>, vector<1x196x128xf32>,
    return
  }
  func.func @transform_0(%arg0: i32) -> (i32, i32, i32) {
    %c0_i32 = arith.constant 0 : i32
    %c0_i32_0 = arith.constant 0 : i32
    %c0_i32_1 = arith.constant 0 : i32
    return %arg0, %c0_i32, %c0_i32_0 : i32, i32, i32
  }
  func.func @transform_1(%arg0: i32) -> (i32, i32) {
    %c0_i32 = arith.constant 0 : i32
    %c0_i32_0 = arith.constant 0 : i32
    %c0_i32_1 = arith.constant 0 : i32
    return %c0_i32, %c0_i32_0 : i32, i32
  }
  func.func @transform_2(%arg0: i32) -> (i32, i32) {
    %c0_i32 = arith.constant 0 : i32
    %c0_i32_0 = arith.constant 0 : i32
    %c0_i32_1 = arith.constant 0 : i32
    return %c0_i32, %c0_i32_0 : i32, i32
  }
  func.func @transform_3(%arg0: i32) -> (i32, i32, i32) {
    %c0_i32 = arith.constant 0 : i32
    %c0_i32_0 = arith.constant 0 : i32
    %c0_i32_1 = arith.constant 0 : i32
    return %arg0, %c0_i32, %c0_i32_0 : i32, i32, i32
  }
}

</mosaic_0001>

<llo_original>
// kernel: primary_capsule_forward.1
$region0: #{primary_capsule_forward.1}
  #allocation0 [shape = 'u32[]', space=smem, size = 0x4, offset = 0x4, fixed_abs, tag = 'smem constant byte address 0x4 - core index']
  #allocation1 [shape = 'u32[144,128]{1,0:T(1,128)}', space=vmem, size = 0x12000, scoped, tag = 'internal scratch']
  %s0 = inlined_call_operand.vmem [shape: bf16[2,196,36], index: 0, kind: input, shape index: {}]
  %s1 = inlined_call_operand.vmem [shape: bf16[36,128], index: 1, kind: input, shape index: {}]
  %s2 = inlined_call_operand.vmem [shape: f32[1,128], index: 2, kind: input, shape index: {}]
  %s3 = inlined_call_operand.vmem [shape: f32[2,196,128], index: 3, kind: output, shape index: {}]
  %s4 = sld [smem:[#allocation0]]
  $region45: #{primary_capsule_forward.1} parent=0
    _
  %s6 = ssub.s32 1, %s4
  %s7 = scalar_select 0, %s6, %s4
  loop: start=0, step=1, limit=4
  $region2: #{primary_capsule_forward.1} parent=0 // loop_pre_header
    _
  $region3: #{primary_capsule_forward.1} parent=0 // loop_header
    %s9 = sphi 0, %s13
    %p10 = scmp.ge.s32.totalorder %s9, 4
    %s19 = sphi 0, %s21
    %s22 = sphi 0, %s19
    %s23 = sphi 0, %s22
    %s39 = sphi 0, %s23
    %s43 = sphi 0, %s43
    %s45 = sphi 0, %s43
    %s46 = sphi 0, %s45
    %s60 = sphi 0, %s46
    %s64 = sphi 0, %s64
    %s66 = sphi 0, %s64
    %s67 = sphi 0, %s66
    %s81 = sphi 0, %s67
    %s87 = sphi 0, %s89
    %s90 = sphi 0, %s87
    %s91 = sphi 0, %s90
    %s107 = sphi 0, %s91
  $region4: #{primary_capsule_forward.1} parent=0 // loop_header_branch
    %12 = sbr.rel (%p10) target = $region8
  $region5: #{primary_capsule_forward.1} parent=0 // loop_body
    %s14 = ssub.s32 %s9, 1
    %s15 = ssub.s32 %s9, 2
    %s16 = sadd.s32 %s9, 1
    %s17 = ssub.s32 %s9, %s16
    %p18 = scmp.eq.s32.totalorder %s17, 0
    %s20 = sadd.s32 %s19, 1
    %s21 = scalar_select %p18, %s19, %s20
    %p24 = pneg %p18
    %p25 = scmp.eq.s32.totalorder %s9, 1
    %p26 = por %p24, %p25
    %p27 = scmp.ne.s32.totalorder %s19, %s22
    %p28 = scmp.eq.s32.totalorder %s9, 0
    %p29 = por %p27, %p28
    %p30 = scmp.ne.s32.totalorder %s19, %s22
    %p31 = scmp.eq.s32.totalorder %s14, 1
    %p32 = por %p30, %p31
    %p33 = scmp.ne.s32.totalorder %s22, %s23
    %p34 = scmp.eq.s32.totalorder %s14, 0
    %p35 = por %p33, %p34
    %p36 = scmp.ne.s32.totalorder %s22, %s23
    %p37 = scmp.eq.s32.totalorder %s15, 1
    %p38 = por %p36, %p37
    %p40 = scmp.ne.s32.totalorder %s23, %s39
    %p41 = scmp.eq.s32.totalorder %s15, 0
    %p42 = por %p40, %p41
    %s44 = sadd.s32 %s43, 1
    %p47 = scmp.eq.s32.totalorder %s9, 1
    %p48 = scmp.ne.s32.totalorder %s43, %s45
    %p49 = scmp.eq.s32.totalorder %s9, 0
    %p50 = por %p48, %p49
    %p51 = scmp.ne.s32.totalorder %s43, %s45
    %p52 = scmp.eq.s32.totalorder %s14, 1
    %p53 = por %p51, %p52
    %p54 = scmp.ne.s32.totalorder %s45, %s46
    %p55 = scmp.eq.s32.totalorder %s14, 0
    %p56 = por %p54, %p55
    %p57 = scmp.ne.s32.totalorder %s45, %s46
    %p58 = scmp.eq.s32.totalorder %s15, 1
    %p59 = por %p57, %p58
    %p61 = scmp.ne.s32.totalorder %s46, %s60
    %p62 = scmp.eq.s32.totalorder %s15, 0
    %p63 = por %p61, %p62
    %s65 = sadd.s32 %s64, 1
    %p68 = scmp.eq.s32.totalorder %s9, 1
    %p69 = scmp.ne.s32.totalorder %s64, %s66
    %p70 = scmp.eq.s32.totalorder %s9, 0
    %p71 = por %p69, %p70
    %p72 = scmp.ne.s32.totalorder %s64, %s66
    %p73 = scmp.eq.s32.totalorder %s14, 1
    %p74 = por %p72, %p73
    %p75 = scmp.ne.s32.totalorder %s66, %s67
    %p76 = scmp.eq.s32.totalorder %s14, 0
    %p77 = por %p75, %p76
    %p78 = scmp.ne.s32.totalorder %s66, %s67
    %p79 = scmp.eq.s32.totalorder %s15, 1
    %p80 = por %p78, %p79
    %p82 = scmp.ne.s32.totalorder %s67, %s81
    %p83 = scmp.eq.s32.totalorder %s15, 0
    %p84 = por %p82, %p83
    %s85 = ssub.s32 %s9, %s16
    %p86 = scmp.eq.s32.totalorder %s85, 0
    %s88 = sadd.s32 %s87, 1
    %s89 = scalar_select %p86, %s87, %s88
    %p92 = pneg %p86
    %p93 = scmp.eq.s32.totalorder %s9, 1
    %p94 = por %p92, %p93
    %p95 = scmp.ne.s32.totalorder %s87, %s90
    %p96 = scmp.eq.s32.totalorder %s9, 0
    %p97 = por %p95, %p96
    %p98 = scmp.ne.s32.totalorder %s87, %s90
    %p99 = scmp.eq.s32.totalorder %s14, 1
    %p100 = por %p98, %p99
    %p101 = scmp.ne.s32.totalorder %s90, %s91
    %p102 = scmp.eq.s32.totalorder %s14, 0
    %p103 = por %p101, %p102
    %p104 = scmp.ne.s32.totalorder %s90, %s91
    %p105 = scmp.eq.s32.totalorder %s15, 1
    %p106 = por %p104, %p105
    %p108 = scmp.ne.s32.totalorder %s91, %s107
    %p109 = scmp.eq.s32.totalorder %s15, 0
    %p110 = por %p108, %p109
    %p111 = scmp.le.s32.totalorder 1, %s9
    %p112 = scmp.lt.s32.totalorder %s9, 3
    %p113 = pnand %p111, %p112
    %p114 = pneg %p113
    // Predicated region
    $region9: #{primary_capsule_forward.1} parent=5 // pred_check
      _
    $region10: #{primary_capsule_forward.1} parent=5 // pred_check_branch
      %116 = sbr.rel (%p113) target = $region12
    $region11: #{primary_capsule_forward.1} parent=5 // pred_region
      %s117 = ssub.s32 %s9, 1
      // Predicated region
      $region13: #{primary_capsule_forward.1} parent=11 // pred_check
        %p118 = pneg %p56
      $region14: #{primary_capsule_forward.1} parent=11 // pred_check_branch
        %120 = sbr.rel (%p118) target = $region16
      $region15: #{primary_capsule_forward.1} parent=11 // pred_region
        _
      $region16: #{primary_capsule_forward.1} parent=11 // pred_fallthru
        _
      // Predicated region
      $region17: #{primary_capsule_forward.1} parent=11 // pred_check
        %p121 = pneg %p77
      $region18: #{primary_capsule_forward.1} parent=11 // pred_check_branch
        %123 = sbr.rel (%p121) target = $region20
      $region19: #{primary_capsule_forward.1} parent=11 // pred_region
        _
      $region20: #{primary_capsule_forward.1} parent=11 // pred_fallthru
        _
    $region12: #{primary_capsule_forward.1} parent=5 // pred_fallthru
      _
    %p124 = scmp.lt.s32.totalorder %s9, 2
    // Predicated region
    $region21: #{primary_capsule_forward.1} parent=5 // pred_check
      %p125 = pneg %p124
    $region22: #{primary_capsule_forward.1} parent=5 // pred_check_branch
      %127 = sbr.rel (%p125) target = $region24
    $region23: #{primary_capsule_forward.1} parent=5 // pred_region
      // Predicated region
      $region25: #{primary_capsule_forward.1} parent=23 // pred_check
        %p128 = pneg %p29
      $region26: #{primary_capsule_forward.1} parent=23 // pred_check_branch
        %130 = sbr.rel (%p128) target = $region28
      $region27: #{primary_capsule_forward.1} parent=23 // pred_region
        %p131 = scmp.lt.s32.totalorder %s9, 1
        %s132 = scalar_select %p131, %s9, 1
        %s133 = smul.addr %s132, 25
        %s134 = smul.addr %s133, 4
        %s135 = scalar_lea.vmem %s0, %s134
      $region28: #{primary_capsule_forward.1} parent=23 // pred_fallthru
        _
    $region24: #{primary_capsule_forward.1} parent=5 // pred_fallthru
      _
    %p136 = scmp.le.s32.totalorder 1, %s9
    %p137 = scmp.lt.s32.totalorder %s9, 3
    %p138 = pnand %p136, %p137
    %p139 = pneg %p138
    // Predicated region
    $region29: #{primary_capsule_forward.1} parent=5 // pred_check
      _
    $region30: #{primary_capsule_forward.1} parent=5 // pred_check_branch
      %141 = sbr.rel (%p138) target = $region32
    $region31: #{primary_capsule_forward.1} parent=5 // pred_region
      %s142 = ssub.s32 %s9, 1
      %p143 = scmp.lt.s32.totalorder %s14, 1
      %s144 = scalar_select %p143, %s14, 1
      %s145 = smul.addr %s144, 25
      %s146 = smul.addr %s145, 4
      %s147 = scalar_lea.vmem %s0, %s146
      %p148 = pneg %p35
      %p149 = pneg %p32
      %p150 = pneg %p56
      %p151 = pneg %p53
      %p152 = pneg %p77
      %p153 = pneg %p74
      %p154 = pneg %p103
      %p155 = pneg %p100
      %p156 = scmp.lt.s32.totalorder %s14, 1
      %s157 = scalar_select %p156, %s14, 1
      %s158 = smul.addr %s157, 25
      %s159 = smul.addr %s158, 8
      %s160 = scalar_lea.vmem %s3, %s159
      %p161 = scmp.lt.s32.totalorder %s14, 1
      %s162 = scalar_select %p161, %s14, 1
      %s163 = smul.addr %s162, 25
      %s164 = smul.addr %s163, 4
      %s165 = scalar_lea.vmem %s0, %s164
      %p166 = scmp.lt.s32.totalorder %s14, 1
      %s167 = scalar_select %p166, %s14, 1
      %s168 = smul.addr %s167, 25
      %s169 = smul.addr %s168, 8
      %s170 = scalar_lea.vmem %s3, %s169
      %v172 = vld [vmem:[%s1] sm:$0xf]
      %v173 = vld [vmem:[%s1 + $0x4] sm:$0xf]
      %v174 = vld [vmem:[%s1 + $0x8] sm:$0xf]
      %v175 = vld [vmem:[%s1 + $0xc] sm:$0xf]
      %v176 = vld [vmem:[%s1 + $0x10] sm:$0x3]
      %v177 = vld [vmem:[%s2] sm:$0x1]
      %v178 = vld [vmem:[%s165] sm:$0xf]
      %v179 = vld [vmem:[%s165 + $0x4] sm:$0xf]
      %v180 = vld [vmem:[%s165 + $0x8] sm:$0xf]
      %v181 = vld [vmem:[%s165 + $0xc] sm:$0xf]
      %v182 = vld [vmem:[%s165 + $0x10] sm:$0xf]
      %v183 = vld [vmem:[%s165 + $0x14] sm:$0xf]
      %v184 = vld [vmem:[%s165 + $0x18] sm:$0xf]
      %v185 = vld [vmem:[%s165 + $0x1c] sm:$0xf]
      %v186 = vld [vmem:[%s165 + $0x20] sm:$0xf]
      %v187 = vld [vmem:[%s165 + $0x24] sm:$0xf]
      %v188 = vld [vmem:[%s165 + $0x28] sm:$0xf]
      %v189 = vld [vmem:[%s165 + $0x2c] sm:$0xf]
      %v190 = vld [vmem:[%s165 + $0x30] sm:$0xf]
      %v191 = vld [vmem:[%s165 + $0x34] sm:$0xf]
      %v192 = vld [vmem:[%s165 + $0x38] sm:$0xf]
      %v193 = vld [vmem:[%s165 + $0x3c] sm:$0xf]
      %v194 = vld [vmem:[%s165 + $0x40] sm:$0xf]
      %v195 = vld [vmem:[%s165 + $0x44] sm:$0xf]
      %v196 = vld [vmem:[%s165 + $0x48] sm:$0xf]
      %v197 = vld [vmem:[%s165 + $0x4c] sm:$0xf]
      %v198 = vld [vmem:[%s165 + $0x50] sm:$0xf]
      %v199 = vld [vmem:[%s165 + $0x54] sm:$0xf]
      %v200 = vld [vmem:[%s165 + $0x58] sm:$0xf]
      %v201 = vld [vmem:[%s165 + $0x5c] sm:$0xf]
      %v202 = vld [vmem:[%s165 + $0x60] sm:$0x3]
      %v204 = vlaneseq
      %v205 = vshrl.u32 %v204, 7
      %v206 = vsub.s32 0, %v205
      %v207 = vrot.slane %v177, %v206
      %v234 = vunpack.c.l.b16 %v178
      %v235 = vunpack.c.l.b16 %v179
      %v236 = vunpack.c.l.b16 %v180
      %v237 = vunpack.c.l.b16 %v181
      %v238 = vunpack.c.l.b16 %v182
      %v239 = vunpack.c.l.b16 %v183
      %v240 = vunpack.c.l.b16 %v184
      %v241 = vunpack.c.l.b16 %v185
      %v242 = vunpack.c.l.b16 %v186
      %v243 = vunpack.c.l.b16 %v187
      %v244 = vunpack.c.l.b16 %v188
      %v245 = vunpack.c.l.b16 %v189
      %v246 = vunpack.c.l.b16 %v190
      %v247 = vunpack.c.l.b16 %v191
      %v248 = vunpack.c.l.b16 %v192
      %v249 = vunpack.c.l.b16 %v193
      %v250 = vunpack.c.l.b16 %v194
      %v251 = vunpack.c.l.b16 %v195
      %v252 = vunpack.c.l.b16 %v196
      %v253 = vunpack.c.l.b16 %v197
      %v254 = vunpack.c.l.b16 %v198
      %v255 = vunpack.c.l.b16 %v199
      %v256 = vunpack.c.l.b16 %v200
      %v257 = vunpack.c.l.b16 %v201
      %v258 = vunpack.c.l.b16 %v202
      %v259 = vpack.c.b16 %v235, %v234
      %v260 = vpack.c.b16 %v237, %v236
      %v261 = vpack.c.b16 %v239, %v238
      %v262 = vpack.c.b16 %v241, %v240
      %v263 = vpack.c.b16 %v243, %v242
      %v264 = vpack.c.b16 %v245, %v244
      %v265 = vpack.c.b16 %v247, %v246
      %v266 = vpack.c.b16 %v249, %v248
      %v267 = vpack.c.b16 %v251, %v250
      %v268 = vpack.c.b16 %v253, %v252
      %v269 = vpack.c.b16 %v255, %v254
      %v270 = vpack.c.b16 %v257, %v256
      %v271 = vpack.c.b16 %v258, %v258
      %v277 = vunpack.c.l.b16 %v172
      %v278 = vunpack.c.l.b16 %v173
      %v279 = vunpack.c.l.b16 %v174
      %v280 = vunpack.c.l.b16 %v175
      %v281 = vunpack.c.l.b16 %v176
      %v282 = vpack.c.b16 %v278, %v277
      %v283 = vpack.c.b16 %v280, %v279
      %v284 = vpack.c.b16 %v281, %v281
      %vm287 = vcmask 293888
      %v289 = vsel %vm287, %v259, 0
      %v292 = vsel %vm287, %v260, 0
      %v295 = vsel %vm287, %v261, 0
      %v298 = vsel %vm287, %v262, 0
      %v301 = vsel %vm287, %v263, 0
      %v304 = vsel %vm287, %v264, 0
      %v307 = vsel %vm287, %v265, 0
      %v310 = vsel %vm287, %v266, 0
      %v313 = vsel %vm287, %v267, 0
      %v316 = vsel %vm287, %v268, 0
      %v319 = vsel %vm287, %v269, 0
      %v322 = vsel %vm287, %v270, 0
      %v325 = vsel %vm287, %v271, 0
      %vm327 = vcmask 1041408
      %v329 = vsel %vm327, %v284, 0
      %331 = vmatprep.subr.bf16.mxu0 0
      %332 = vmatpush1.bf16.msra.mxu0 0
      %333 = vmatprep.subr.bf16.mxu0 0
      %334 = vmatpush1.bf16.msra.mxu0 0
      %335 = vmatprep.subr.bf16.mxu0 0
      %336 = vmatpush1.bf16.msra.mxu0 0
      %337 = vmatprep.subr.bf16.mxu0 0
      %338 = vmatpush1.bf16.msra.mxu0 0
      %339 = vmatprep.subr.bf16.mxu0 0
      %340 = vmatpush1.bf16.msra.mxu0 0
      %341 = vmatprep.subr.bf16.mxu0 0
      %342 = vmatpush1.bf16.msra.mxu0 %v329
      %343 = vmatprep.subr.bf16.mxu0 0
      %344 = vmatpush1.bf16.msra.mxu0 %v283
      %345 = vmatprep.subr.bf16.mxu0 0
      %346 = vmatpush1.bf16.msra.mxu0 %v282
      %347 = vmatprep.subr.bf16.mxu0 0
      %348 = vmatpush2.bf16.msra.mxu0 0
      %349 = vmatprep.subr.bf16.mxu0 0
      %350 = vmatpush2.bf16.msra.mxu0 0
      %351 = vmatprep.subr.bf16.mxu0 0
      %352 = vmatpush2.bf16.msra.mxu0 0
      %353 = vmatprep.subr.bf16.mxu0 0
      %354 = vmatpush2.bf16.msra.mxu0 0
      %355 = vmatprep.subr.bf16.mxu0 0
      %356 = vmatpush2.bf16.msra.mxu0 0
      %357 = vmatprep.subr.bf16.mxu0 0
      %358 = vmatpush2.bf16.msra.mxu0 0
      %359 = vmatprep.subr.bf16.mxu0 0
      %360 = vmatpush2.bf16.msra.mxu0 0
      %361 = vmatprep.subr.bf16.mxu0 0
      %362 = vmatpush2.bf16.msra.mxu0 0
      %363 = vmatprep.mubr.bf16.mxu0 0
      %364 = vmatmul.mubr.bf16.gmra.mxu0 %v289
      %v365 = vpop.f32.mrf.mxu0
      %v366 = vadd.f32 %v207, %v365
      %v367 = vpop.f32.mrf.mxu0
      %v368 = vpop.f32.mrf.mxu0
      %v369 = vadd.f32 %v207, %v368
      %v370 = vpop.f32.mrf.mxu0
      %371 = vmatprep.mubr.bf16.mxu0 0
      %372 = vmatmul.mubr.bf16.gmra.mxu0 %v292
      %v373 = vpop.f32.mrf.mxu0
      %v374 = vadd.f32 %v207, %v373
      %v375 = vpop.f32.mrf.mxu0
      %v376 = vpop.f32.mrf.mxu0
      %v377 = vadd.f32 %v207, %v376
      %v378 = vpop.f32.mrf.mxu0
      %379 = vmatprep.mubr.bf16.mxu0 0
      %380 = vmatmul.mubr.bf16.gmra.mxu0 %v295
      %v381 = vpop.f32.mrf.mxu0
      %v382 = vadd.f32 %v207, %v381
      %v383 = vpop.f32.mrf.mxu0
      %v384 = vpop.f32.mrf.mxu0
      %v385 = vadd.f32 %v207, %v384
      %v386 = vpop.f32.mrf.mxu0
      %387 = vmatprep.mubr.bf16.mxu0 0
      %388 = vmatmul.mubr.bf16.gmra.mxu0 %v298
      %v389 = vpop.f32.mrf.mxu0
      %v390 = vadd.f32 %v207, %v389
      %v391 = vpop.f32.mrf.mxu0
      %v392 = vpop.f32.mrf.mxu0
      %v393 = vadd.f32 %v207, %v392
      %v394 = vpop.f32.mrf.mxu0
      %395 = vmatprep.mubr.bf16.mxu0 0
      %396 = vmatmul.mubr.bf16.gmra.mxu0 %v301
      %v397 = vpop.f32.mrf.mxu0
      %v398 = vadd.f32 %v207, %v397
      %v399 = vpop.f32.mrf.mxu0
      %v400 = vpop.f32.mrf.mxu0
      %v401 = vadd.f32 %v207, %v400
      %v402 = vpop.f32.mrf.mxu0
      %403 = vmatprep.mubr.bf16.mxu0 0
      %404 = vmatmul.mubr.bf16.gmra.mxu0 %v304
      %v405 = vpop.f32.mrf.mxu0
      %v406 = vadd.f32 %v207, %v405
      %v407 = vpop.f32.mrf.mxu0
      %v408 = vpop.f32.mrf.mxu0
      %v409 = vadd.f32 %v207, %v408
      %v410 = vpop.f32.mrf.mxu0
      %411 = vmatprep.mubr.bf16.mxu0 0
      %412 = vmatmul.mubr.bf16.gmra.mxu0 %v307
      %v413 = vpop.f32.mrf.mxu0
      %v414 = vadd.f32 %v207, %v413
      %v415 = vpop.f32.mrf.mxu0
      %v416 = vpop.f32.mrf.mxu0
      %v417 = vadd.f32 %v207, %v416
      %v418 = vpop.f32.mrf.mxu0
      %419 = vmatprep.mubr.bf16.mxu0 0
      %420 = vmatmul.mubr.bf16.gmra.mxu0 %v310
      %v421 = vpop.f32.mrf.mxu0
      %v422 = vadd.f32 %v207, %v421
      %v423 = vpop.f32.mrf.mxu0
      %v424 = vpop.f32.mrf.mxu0
      %v425 = vadd.f32 %v207, %v424
      %v426 = vpop.f32.mrf.mxu0
      %427 = vmatprep.mubr.bf16.mxu0 0
      %428 = vmatmul.mubr.bf16.gmra.mxu0 %v313
      %v429 = vpop.f32.mrf.mxu0
      %v430 = vadd.f32 %v207, %v429
      %v431 = vpop.f32.mrf.mxu0
      %v432 = vpop.f32.mrf.mxu0
      %v433 = vadd.f32 %v207, %v432
      %v434 = vpop.f32.mrf.mxu0
      %435 = vmatprep.mubr.bf16.mxu0 0
      %436 = vmatmul.mubr.bf16.gmra.mxu0 %v316
      %v437 = vpop.f32.mrf.mxu0
      %v438 = vadd.f32 %v207, %v437
      %v439 = vpop.f32.mrf.mxu0
      %v440 = vpop.f32.mrf.mxu0
      %v441 = vadd.f32 %v207, %v440
      %v442 = vpop.f32.mrf.mxu0
      %443 = vmatprep.mubr.bf16.mxu0 0
      %444 = vmatmul.mubr.bf16.gmra.mxu0 %v319
      %v445 = vpop.f32.mrf.mxu0
      %v446 = vadd.f32 %v207, %v445
      %v447 = vpop.f32.mrf.mxu0
      %v448 = vpop.f32.mrf.mxu0
      %v449 = vadd.f32 %v207, %v448
      %v450 = vpop.f32.mrf.mxu0
      %451 = vmatprep.mubr.bf16.mxu0 0
      %452 = vmatmul.mubr.bf16.gmra.mxu0 %v322
      %v453 = vpop.f32.mrf.mxu0
      %v454 = vadd.f32 %v207, %v453
      %v455 = vpop.f32.mrf.mxu0
      %v456 = vpop.f32.mrf.mxu0
      %v457 = vadd.f32 %v207, %v456
      %v458 = vpop.f32.mrf.mxu0
      %459 = vmatprep.mubr.bf16.mxu0 0
      %460 = vmatmul.mubr.bf16.gmra.mxu0 %v325
      %v461 = vpop.f32.mrf.mxu0
      %v462 = vadd.f32 %v207, %v461
      %v463 = vpop.f32.mrf.mxu0
      %v464 = vpop.f32.mrf.mxu0
      %v465 = vpop.f32.mrf.mxu0
      %466 = vdwg.mxu0
      %467 = vst [vmem:[%s170] sm:$0xff] %v366
      %468 = vst [vmem:[%s170 + $0x8] sm:$0xff] %v369
      %469 = vst [vmem:[%s170 + $0x10] sm:$0xff] %v374
      %470 = vst [vmem:[%s170 + $0x18] sm:$0xff] %v377
      %471 = vst [vmem:[%s170 + $0x20] sm:$0xff] %v382
      %472 = vst [vmem:[%s170 + $0x28] sm:$0xff] %v385
      %473 = vst [vmem:[%s170 + $0x30] sm:$0xff] %v390
      %474 = vst [vmem:[%s170 + $0x38] sm:$0xff] %v393
      %475 = vst [vmem:[%s170 + $0x40] sm:$0xff] %v398
      %476 = vst [vmem:[%s170 + $0x48] sm:$0xff] %v401
      %477 = vst [vmem:[%s170 + $0x50] sm:$0xff] %v406
      %478 = vst [vmem:[%s170 + $0x58] sm:$0xff] %v409
      %479 = vst [vmem:[%s170 + $0x60] sm:$0xff] %v414
      %480 = vst [vmem:[%s170 + $0x68] sm:$0xff] %v417
      %481 = vst [vmem:[%s170 + $0x70] sm:$0xff] %v422
      %482 = vst [vmem:[%s170 + $0x78] sm:$0xff] %v425
      %483 = vst [vmem:[%s170 + $0x80] sm:$0xff] %v430
      %484 = vst [vmem:[%s170 + $0x88] sm:$0xff] %v433
      %485 = vst [vmem:[%s170 + $0x90] sm:$0xff] %v438
      %486 = vst [vmem:[%s170 + $0x98] sm:$0xff] %v441
      %487 = vst [vmem:[%s170 + $0xa0] sm:$0xff] %v446
      %488 = vst [vmem:[%s170 + $0xa8] sm:$0xff] %v449
      %489 = vst [vmem:[%s170 + $0xb0] sm:$0xff] %v454
      %490 = vst [vmem:[%s170 + $0xb8] sm:$0xff] %v457
      %491 = vst [vmem:[%s170 + $0xc0] sm:$0xf] %v462
      %p492 = scmp.lt.s32.totalorder %s14, 1
      %s493 = scalar_select %p492, %s14, 1
      %s494 = smul.addr %s493, 25
      %s495 = smul.addr %s494, 8
      %s496 = scalar_lea.vmem %s3, %s495
      // Predicated region
      $region33: #{primary_capsule_forward.1} parent=31 // pred_check
        %p497 = pneg %p100
      $region34: #{primary_capsule_forward.1} parent=31 // pred_check_branch
        %499 = sbr.rel (%p497) target = $region36
      $region35: #{primary_capsule_forward.1} parent=31 // pred_region
        _
      $region36: #{primary_capsule_forward.1} parent=31 // pred_fallthru
        _
    $region32: #{primary_capsule_forward.1} parent=5 // pred_fallthru
      _
    %p500 = scmp.le.s32.totalorder 2, %s9
    // Predicated region
    $region37: #{primary_capsule_forward.1} parent=5 // pred_check
      %p501 = pneg %p500
    $region38: #{primary_capsule_forward.1} parent=5 // pred_check_branch
      %503 = sbr.rel (%p501) target = $region40
    $region39: #{primary_capsule_forward.1} parent=5 // pred_region
      %s504 = ssub.s32 %s9, 2
      // Predicated region
      $region41: #{primary_capsule_forward.1} parent=39 // pred_check
        %p505 = pneg %p106
      $region42: #{primary_capsule_forward.1} parent=39 // pred_check_branch
        %507 = sbr.rel (%p505) target = $region44
      $region43: #{primary_capsule_forward.1} parent=39 // pred_region
        %p508 = scmp.lt.s32.totalorder %s15, 1
        %s509 = scalar_select %p508, %s15, 1
        %s510 = smul.addr %s509, 25
        %s511 = smul.addr %s510, 8
        %s512 = scalar_lea.vmem %s3, %s511
      $region44: #{primary_capsule_forward.1} parent=39 // pred_fallthru
        _
    $region40: #{primary_capsule_forward.1} parent=5 // pred_fallthru
      _
  $region6: #{primary_capsule_forward.1} parent=0 // loop_footer
    %s13 = sadd.s32 1, %s9
  $region7: #{primary_capsule_forward.1} parent=0 // loop_footer_branch
    %8 = sbr.rel target = $region3
  $region8: #{primary_capsule_forward.1} parent=0 // loop_exit
    _

</llo_original>
